<compile_context>
chip_gen: v5e
topology: v5e:2x2
jax: 0.10.0
libtpu: 0.0.40
codegen_flags: <defaults>
</compile_context>

<pallas_src>
import jax
import jax.numpy as jnp
import numpy as np
from jax.experimental import pallas as pl
from jax.experimental.pallas import tpu as pltpu

LN_EPS = 1e-5  # PyTorch LayerNorm default


def _round_up(v, m):
    return (v + m - 1) // m * m


def sds_conv_kernel(x_ref, w_ref, b_ref, g_ref, bt_ref, wqa_ref, bqa_ref,
                    out_ref, h_ref, xcat_ref):
    n = pl.program_id(1)                 # layer index (arbitrary/sequential axis)
    n_layers = pl.num_programs(1)
    S, H = h_ref.shape

    @pl.when(n == 0)
    def _():
        h_ref[...] = x_ref[0]            # start the carry from the input block

    h = h_ref[...]                       # (S, H) f32 carry

    # k=3 receptive field via XLU lane rotations + edge masks (no concat copies).
    lane = jax.lax.broadcasted_iota(jnp.int32, (S, H), 1)
    h_m1 = jnp.where(lane == 0, 0.0, pltpu.roll(h, 1, axis=1))          # h[:, l-1]
    h_p1 = jnp.where(lane == H - 1, 0.0, pltpu.roll(h, H - 1, axis=1))  # h[:, l+1]

    # (3S, H) bf16 K-stack for the fused conv1+conv2 matmul: slice stores into
    # a persistent scratch instead of a value-level axis-0 concatenate.
    xcat_ref[pl.ds(0, S), :] = h_m1.astype(jnp.bfloat16)
    xcat_ref[pl.ds(S, S), :] = h.astype(jnp.bfloat16)
    xcat_ref[pl.ds(2 * S, S), :] = h_p1.astype(jnp.bfloat16)

    # Fused conv1(k=3)+conv2(k=1): single bf16 MXU matmul, f32 accumulate.
    pre = jnp.dot(w_ref[0], xcat_ref[...],
                  preferred_element_type=jnp.float32) + b_ref[0]        # (S, H)

    hn = h + jnp.maximum(pre, 0.0)       # residual + relu (f32)

    # LayerNorm over the hidden (lane) dim, f32.
    mean = jnp.mean(hn, axis=-1, keepdims=True)
    cen = hn - mean
    var = jnp.mean(cen * cen, axis=-1, keepdims=True)
    hn = cen * jax.lax.rsqrt(var + LN_EPS) * g_ref[0] + bt_ref[0]
    h_ref[...] = hn

    @pl.when(n == n_layers - 1)
    def _():
        # qa head: bf16 MXU matmul on lane-dense (>=128) padded output columns,
        # f32 result written as a full-lane tile.
        out_ref[0] = (jnp.dot(hn.astype(jnp.bfloat16), wqa_ref[...],
                              preferred_element_type=jnp.float32)
                      + bqa_ref[...])


def sds_conv_layer_forward(x, params):
    """x: (B, S, H) float32, S = input_size (conv channels), H = hidden_size.
    Returns (B, S, num_labels)."""
    B, S, H = x.shape
    NL = params["w_qa"].shape[0]
    NLP = _round_up(max(NL, 128), 128)          # lane-dense padded label dim
    HIGH = jax.lax.Precision.HIGHEST
    L = len(params["layers"])

    # One-time conv1/conv2 algebraic fold (no nonlinearity between them):
    #   W_eff = W2 @ [W1[...,0] | W1[...,1] | W1[...,2]],  b_eff = W2 @ b1 + b2
    w_eff_l, b_eff_l, gamma_l, beta_l = [], [], [], []
    for lp in params["layers"]:
        w1, b1 = lp["w1"], lp["b1"]                 # (2S, S, 3), (2S,)
        w2, b2 = lp["w2"], lp["b2"]                 # (S, 2S, 1), (S,)
        w1_cat = jnp.concatenate(
            [w1[:, :, 0], w1[:, :, 1], w1[:, :, 2]], axis=1)    # (2S, 3S)
        w2m = w2[:, :, 0]                                       # (S, 2S)
        w_eff_l.append(jnp.dot(w2m, w1_cat, precision=HIGH))    # (S, 3S)
        b_eff_l.append(jnp.dot(w2m, b1, precision=HIGH) + b2)   # (S,)
        gamma_l.append(lp["gamma"])
        beta_l.append(lp["beta"])

    w_eff = jnp.stack(w_eff_l).astype(jnp.bfloat16)   # (L, S, 3S) bf16 MXU operand
    b_eff = jnp.stack(b_eff_l)[:, :, None]            # (L, S, 1) f32
    gamma = jnp.stack(gamma_l)[:, None, :]            # (L, 1, H) f32
    beta = jnp.stack(beta_l)[:, None, :]              # (L, 1, H) f32

    # Lane-dense qa head: pad NL -> NLP so the final store is an unmasked full
    # 128-lane vst and the MXU N dim is not 2/256 wide.
    wqa_pad = jnp.zeros((H, NLP), jnp.bfloat16).at[:, :NL].set(
        params["w_qa"].T.astype(jnp.bfloat16))
    bqa_pad = jnp.zeros((1, NLP), jnp.float32).at[0, :NL].set(params["b_qa"])

    # Explicit scoped-VMEM budget (per-step blocks are double-buffered).
    def buf_bytes(shape, itemsize, sub=8):
        shape = list(shape)
        lead = int(np.prod(shape[:-2])) if len(shape) > 2 else 1
        return lead * _round_up(shape[-2], sub) * _round_up(shape[-1], 128) * itemsize

    blocks = (buf_bytes((1, S, H), 4) + buf_bytes((1, S, 3 * S), 2, 16)
              + buf_bytes((1, S, 1), 4) + 2 * buf_bytes((1, 1, H), 4)
              + buf_bytes((H, NLP), 2, 16) + buf_bytes((1, NLP), 4)
              + buf_bytes((1, S, NLP), 4))
    scratch = buf_bytes((S, H), 4) + buf_bytes((3 * S, H), 2, 16)
    temps = 8 * buf_bytes((S, H), 4) + 2 * buf_bytes((S, 3 * S), 4)
    vmem_limit = int(min(max(2 * (2 * blocks + scratch + temps),
                             32 * 1024 * 1024), 64 * 1024 * 1024))

    out = pl.pallas_call(
        sds_conv_kernel,
        out_shape=jax.ShapeDtypeStruct((B, S, NLP), jnp.float32),
        grid=(B, L),
        in_specs=[
            pl.BlockSpec((1, S, H), lambda b, n: (b, 0, 0)),        # x (per batch)
            pl.BlockSpec((1, S, 3 * S), lambda b, n: (n, 0, 0)),    # fused conv W (per layer)
            pl.BlockSpec((1, S, 1), lambda b, n: (n, 0, 0)),        # fused conv b
            pl.BlockSpec((1, 1, H), lambda b, n: (n, 0, 0)),        # LN gamma
            pl.BlockSpec((1, 1, H), lambda b, n: (n, 0, 0)),        # LN beta
            pl.BlockSpec((H, NLP), lambda b, n: (0, 0)),            # qa W^T (lane-padded)
            pl.BlockSpec((1, NLP), lambda b, n: (0, 0)),            # qa bias (lane-padded)
        ],
        out_specs=pl.BlockSpec((1, S, NLP), lambda b, n: (b, 0, 0)),
        scratch_shapes=[
            pltpu.VMEM((S, H), jnp.float32),        # h carry across layer steps
            pltpu.VMEM((3 * S, H), jnp.bfloat16),   # K-stacked conv input
        ],
        compiler_params=pltpu.CompilerParams(
            dimension_semantics=("parallel", "arbitrary"),   # batch parallel, layers sequential
            vmem_limit_bytes=vmem_limit),
    )(x, w_eff, b_eff, gamma, beta, wqa_pad, bqa_pad)
    return out[:, :, :NL]


def ref_forward(x, params):
    """Pure-JAX reference of SDS_Conv_Layer.forward (unfused, PyTorch op order, f32)."""
    HIGH = jax.lax.Precision.HIGHEST
    B, S, H = x.shape
    h = x
    for lp in params["layers"]:
        w1, b1, w2, b2 = lp["w1"], lp["b1"], lp["w2"], lp["b2"]
        hp = jnp.pad(h, ((0, 0), (0, 0), (1, 1)))                       # pad L dim
        out1 = (jnp.einsum("oc,bcl->bol", w1[:, :, 0], hp[:, :, 0:H], precision=HIGH)
                + jnp.einsum("oc,bcl->bol", w1[:, :, 1], hp[:, :, 1:H + 1], precision=HIGH)
                + jnp.einsum("oc,bcl->bol", w1[:, :, 2], hp[:, :, 2:H + 2], precision=HIGH)
                + b1[None, :, None])                                    # conv1 (k=3)
        out2 = (jnp.einsum("oc,bcl->bol", w2[:, :, 0], out1, precision=HIGH)
                + b2[None, :, None])                                    # conv2 (k=1)
        h = h + jax.nn.relu(out2)
        mean = h.mean(-1, keepdims=True)
        var = ((h - mean) ** 2).mean(-1, keepdims=True)
        h = (h - mean) / jnp.sqrt(var + LN_EPS) * lp["gamma"] + lp["beta"]
    return jnp.einsum("bsh,nh->bsn", h, params["w_qa"], precision=HIGH) + params["b_qa"]


def init_params(key, hidden_size, input_size, num_labels, n_layers=5):
    keys = jax.random.split(key, n_layers * 6 + 2)
    u = lambda kk, shape, k: jax.random.uniform(kk, shape, jnp.float32, -k, k)
    layers = []
    ki = 0
    for _ in range(n_layers):
        k1 = 1.0 / np.sqrt(input_size * 3)       # conv1 fan_in = in_ch * ksize
        k2 = 1.0 / np.sqrt(input_size * 2 * 1)   # conv2 fan_in
        layers.append({
            "w1": u(keys[ki + 0], (2 * input_size, input_size, 3), k1),
            "b1": u(keys[ki + 1], (2 * input_size,), k1),
            "w2": u(keys[ki + 2], (input_size, 2 * input_size, 1), k2),
            "b2": u(keys[ki + 3], (input_size,), k2),
            "gamma": 1.0 + 0.1 * jax.random.normal(keys[ki + 4], (hidden_size,), jnp.float32),
            "beta": 0.1 * jax.random.normal(keys[ki + 5], (hidden_size,), jnp.float32),
        })
        ki += 6
    kq = 1.0 / np.sqrt(hidden_size)
    return {
        "layers": layers,
        "w_qa": u(keys[ki], (num_labels, hidden_size), kq),
        "b_qa": u(keys[ki + 1], (num_labels,), kq),
    }


if __name__ == "__main__":
    # B=batch, S=input_size (max seq len / conv channels), H=hidden_size, NL=num_labels
    B, S, H, NL = 2, 16, 32, 2
    key = jax.random.PRNGKey(0)
    kx, kp = jax.random.split(key)
    x = jax.random.normal(kx, (B, S, H), jnp.float32)
    params = init_params(kp, H, S, NL)

    out = jax.block_until_ready(sds_conv_layer_forward(x, params))
    ref = jax.block_until_ready(ref_forward(x, params))

    assert out.shape == (B, S, NL), out.shape
    # bf16 MXU operands in the kernel vs an f32 reference => relaxed tolerance.
    np.testing.assert_allclose(np.asarray(out), np.asarray(ref), atol=2e-2, rtol=2e-2)
    print("KERNEL_OK")
</pallas_src>

<mosaic_0001>
module attributes {stable_mosaic.version = 11 : i64} {
  func.func @sds_conv_kernel(%arg0: i32, %arg1: i32, %arg2: memref<1x16x32xf32, #tpu.memory_space<vmem>>, %arg3: memref<1x16x48xbf16, #tpu.memory_space<vmem>>, %arg4: memref<1x16x1xf32, #tpu.memory_space<vmem>>, %arg5: memref<1x1x32xf32, #tpu.memory_space<vmem>>, %arg6: memref<1x1x32xf32, #tpu.memory_space<vmem>>, %arg7: memref<32x128xbf16, #tpu.memory_space<vmem>>, %arg8: memref<1x128xf32, #tpu.memory_space<vmem>>, %arg9: memref<1x16x128xf32, #tpu.memory_space<vmem>>, %arg10: memref<16x32xf32, #tpu.memory_space<vmem>>, %arg11: memref<48x32xbf16, #tpu.memory_space<vmem>>) attributes {dimension_semantics = [#tpu.dimension_semantics<parallel>, #tpu.dimension_semantics<arbitrary>], iteration_bounds = array<i64: 2, 5>, scalar_prefetch = 0 : i64, scratch_operands = 2 : i64, tpu.core_type = #tpu.core_type<tc>, window_params = [{transform_indices = @transform_0, window_bounds = array<i64: 1, 16, 32>}, {transform_indices = @transform_1, window_bounds = array<i64: 1, 16, 48>}, {transform_indices = @transform_2, window_bounds = array<i64: 1, 16, 1>}, {transform_indices = @transform_3, window_bounds = array<i64: 1, 1, 32>}, {transform_indices = @transform_4, window_bounds = array<i64: 1, 1, 32>}, {pipeline_mode = #tpu.pipeline_mode<synchronous>, transform_indices = @transform_5, window_bounds = array<i64: 32, 128>}, {pipeline_mode = #tpu.pipeline_mode<synchronous>, transform_indices = @transform_6, window_bounds = array<i64: 1, 128>}, {transform_indices = @transform_7, window_bounds = array<i64: 1, 16, 128>}]} {
    %c0_i32 = arith.constant 0 : i32
    %0 = arith.cmpi eq, %arg1, %c0_i32 : i32
    %1 = arith.extui %0 : i1 to i32
    %c0_i32_0 = arith.constant 0 : i32
    %2 = arith.cmpi ne, %1, %c0_i32_0 : i32
    scf.if %2 {
      %c0_33 = arith.constant 0 : index
      %c0_34 = arith.constant 0 : index
      %c0_35 = arith.constant 0 : index
      %60 = vector.load %arg2[%c0_33, %c0_34, %c0_35] : memref<1x16x32xf32, #tpu.memory_space<vmem>>, vector<1x16x32xf32>
      %61 = vector.shape_cast %60 : vector<1x16x32xf32> to vector<16x32xf32>
      %c0_36 = arith.constant 0 : index
      %c0_37 = arith.constant 0 : index
      %62 = vector.load %arg10[%c0_36, %c0_37] : memref<16x32xf32, #tpu.memory_space<vmem>>, vector<16x32xf32>
      tpu.vector_store %arg10[%c0_36, %c0_37], %61 {strides = array<i32>} : memref<16x32xf32, #tpu.memory_space<vmem>>, vector<16x32xf32>,
    } else {
    }
    %c0 = arith.constant 0 : index
    %c0_1 = arith.constant 0 : index
    %3 = vector.load %arg10[%c0, %c0_1] : memref<16x32xf32, #tpu.memory_space<vmem>>, vector<16x32xf32>
    %4 = tpu.iota {dimensions = array<i32: 1>} : vector<16x32xi32>
    %c0_i32_2 = arith.constant 0 : i32
    %5 = vector.broadcast %c0_i32_2 : i32 to vector<16x32xi32>
    %6 = arith.cmpi eq, %4, %5 : vector<16x32xi32>
    %c1_i32 = arith.constant 1 : i32
    %7 = tpu.dynamic_rotate %3 by %c1_i32 dim 1 : vector<16x32xf32>, i32 -> vector<16x32xf32>
    %cst = arith.constant 0.000000e+00 : f32
    %8 = vector.broadcast %cst : f32 to vector<16x32xf32>
    %9 = arith.select %6, %8, %7 : vector<16x32xi1>, vector<16x32xf32>
    %c31_i32 = arith.constant 31 : i32
    %10 = vector.broadcast %c31_i32 : i32 to vector<16x32xi32>
    %11 = arith.cmpi eq, %4, %10 : vector<16x32xi32>
    %c31_i32_3 = arith.constant 31 : i32
    %12 = tpu.dynamic_rotate %3 by %c31_i32_3 dim 1 : vector<16x32xf32>, i32 -> vector<16x32xf32>
    %cst_4 = arith.constant 0.000000e+00 : f32
    %13 = vector.broadcast %cst_4 : f32 to vector<16x32xf32>
    %14 = arith.select %11, %13, %12 : vector<16x32xi1>, vector<16x32xf32>
    %15 = arith.truncf %9 : vector<16x32xf32> to vector<16x32xbf16>
    %c0_5 = arith.constant 0 : index
    %c0_6 = arith.constant 0 : index
    %16 = vector.load %arg11[%c0_5, %c0_6] : memref<48x32xbf16, #tpu.memory_space<vmem>>, vector<16x32xbf16>
    tpu.vector_store %arg11[%c0_5, %c0_6], %15 {strides = array<i32>} : memref<48x32xbf16, #tpu.memory_space<vmem>>, vector<16x32xbf16>,
    %17 = arith.truncf %3 : vector<16x32xf32> to vector<16x32xbf16>
    %c16 = arith.constant 16 : index
    %c0_7 = arith.constant 0 : index
    %18 = vector.load %arg11[%c16, %c0_7] : memref<48x32xbf16, #tpu.memory_space<vmem>>, vector<16x32xbf16>
    tpu.vector_store %arg11[%c16, %c0_7], %17 {strides = array<i32>} : memref<48x32xbf16, #tpu.memory_space<vmem>>, vector<16x32xbf16>,
    %19 = arith.truncf %14 : vector<16x32xf32> to vector<16x32xbf16>
    %c32 = arith.constant 32 : index
    %c0_8 = arith.constant 0 : index
    %20 = vector.load %arg11[%c32, %c0_8] : memref<48x32xbf16, #tpu.memory_space<vmem>>, vector<16x32xbf16>
    tpu.vector_store %arg11[%c32, %c0_8], %19 {strides = array<i32>} : memref<48x32xbf16, #tpu.memory_space<vmem>>, vector<16x32xbf16>,
    %c0_9 = arith.constant 0 : index
    %c0_10 = arith.constant 0 : index
    %c0_11 = arith.constant 0 : index
    %21 = vector.load %arg3[%c0_9, %c0_10, %c0_11] : memref<1x16x48xbf16, #tpu.memory_space<vmem>>, vector<1x16x48xbf16>
    %22 = vector.shape_cast %21 : vector<1x16x48xbf16> to vector<16x48xbf16>
    %c0_12 = arith.constant 0 : index
    %c0_13 = arith.constant 0 : index
    %23 = vector.load %arg11[%c0_12, %c0_13] : memref<48x32xbf16, #tpu.memory_space<vmem>>, vector<48x32xbf16>
    %cst_14 = arith.constant dense<0.000000e+00> : vector<16x32xf32>
    %24 = tpu.matmul %22, %23, %cst_14 {dimension_numbers = #tpu.dot_dimension_numbers<[1], [0], [0], [1], [0, 0, 1, 1], [], []>} : vector<16x48xbf16>, vector<48x32xbf16>, vector<16x32xf32> -> vector<16x32xf32>
    %c0_15 = arith.constant 0 : index
    %c0_16 = arith.constant 0 : index
    %c0_17 = arith.constant 0 : index
    %25 = vector.load %arg4[%c0_15, %c0_16, %c0_17] : memref<1x16x1xf32, #tpu.memory_space<vmem>>, vector<1x16x1xf32>
    %26 = vector.shape_cast %25 : vector<1x16x1xf32> to vector<16x1xf32>
    %27 = vector.broadcast %26 : vector<16x1xf32> to vector<16x32xf32>
    %28 = arith.addf %24, %27 : vector<16x32xf32>
    %cst_18 = arith.constant 0.000000e+00 : f32
    %29 = vector.broadcast %cst_18 : f32 to vector<16x32xf32>
    %30 = arith.maximumf %28, %29 : vector<16x32xf32>
    %31 = arith.addf %3, %30 : vector<16x32xf32>
    %cst_19 = arith.constant dense<0.000000e+00> : vector<16xf32>
    %32 = vector.multi_reduction <add>, %31, %cst_19 [1] : vector<16x32xf32> to vector<16xf32>
    %33 = vector.shape_cast %32 : vector<16xf32> to vector<16x1xf32>
    %cst_20 = arith.constant 3.200000e+01 : f32
    %34 = vector.broadcast %cst_20 : f32 to vector<16x1xf32>
    %35 = arith.divf %33, %34 : vector<16x1xf32>
    %36 = vector.broadcast %35 : vector<16x1xf32> to vector<16x32xf32>
    %37 = arith.subf %31, %36 : vector<16x32xf32>
    %38 = arith.mulf %37, %37 : vector<16x32xf32>
    %cst_21 = arith.constant dense<0.000000e+00> : vector<16xf32>
    %39 = vector.multi_reduction <add>, %38, %cst_21 [1] : vector<16x32xf32> to vector<16xf32>
    %40 = vector.shape_cast %39 : vector<16xf32> to vector<16x1xf32>
    %cst_22 = arith.constant 3.200000e+01 : f32
    %41 = vector.broadcast %cst_22 : f32 to vector<16x1xf32>
    %42 = arith.divf %40, %41 : vector<16x1xf32>
    %cst_23 = arith.constant 9.99999974E-6 : f32
    %43 = vector.broadcast %cst_23 : f32 to vector<16x1xf32>
    %44 = arith.addf %42, %43 : vector<16x1xf32>
    %45 = math.rsqrt %44 : vector<16x1xf32>
    %46 = vector.broadcast %45 : vector<16x1xf32> to vector<16x32xf32>
    %47 = arith.mulf %37, %46 : vector<16x32xf32>
    %c0_24 = arith.constant 0 : index
    %c0_25 = arith.constant 0 : index
    %c0_26 = arith.constant 0 : index
    %48 = vector.load %arg5[%c0_24, %c0_25, %c0_26] : memref<1x1x32xf32, #tpu.memory_space<vmem>>, vector<1x1x32xf32>
    %49 = vector.shape_cast %48 : vector<1x1x32xf32> to vector<1x32xf32>
    %50 = vector.broadcast %49 : vector<1x32xf32> to vector<16x32xf32>
    %51 = arith.mulf %47, %50 : vector<16x32xf32>
    %c0_27 = arith.constant 0 : index
    %c0_28 = arith.constant 0 : index
    %c0_29 = arith.constant 0 : index
    %52 = vector.load %arg6[%c0_27, %c0_28, %c0_29] : memref<1x1x32xf32, #tpu.memory_space<vmem>>, vector<1x1x32xf32>
    %53 = vector.shape_cast %52 : vector<1x1x32xf32> to vector<1x32xf32>
    %54 = vector.broadcast %53 : vector<1x32xf32> to vector<16x32xf32>
    %55 = arith.addf %51, %54 : vector<16x32xf32>
    %c0_30 = arith.constant 0 : index
    %c0_31 = arith.constant 0 : index
    %56 = vector.load %arg10[%c0_30, %c0_31] : memref<16x32xf32, #tpu.memory_space<vmem>>, vector<16x32xf32>
    tpu.vector_store %arg10[%c0_30, %c0_31], %55 {strides = array<i32>} : memref<16x32xf32, #tpu.memory_space<vmem>>, vector<16x32xf32>,
    %c4_i32 = arith.constant 4 : i32
    %57 = arith.cmpi eq, %arg1, %c4_i32 : i32
    %58 = arith.extui %57 : i1 to i32
    %c0_i32_32 = arith.constant 0 : i32
    %59 = arith.cmpi ne, %58, %c0_i32_32 : i32
    scf.if %59 {
      %60 = arith.truncf %55 : vector<16x32xf32> to vector<16x32xbf16>
      %c0_33 = arith.constant 0 : index
      %c0_34 = arith.constant 0 : index
      %61 = vector.load %arg7[%c0_33, %c0_34] : memref<32x128xbf16, #tpu.memory_space<vmem>>, vector<32x128xbf16>
      %cst_35 = arith.constant dense<0.000000e+00> : vector<16x128xf32>
      %62 = tpu.matmul %60, %61, %cst_35 {dimension_numbers = #tpu.dot_dimension_numbers<[1], [0], [0], [1], [0, 0, 1, 1], [], []>} : vector<16x32xbf16>, vector<32x128xbf16>, vector<16x128xf32> -> vector<16x128xf32>
      %c0_36 = arith.constant 0 : index
      %c0_37 = arith.constant 0 : index
      %63 = vector.load %arg8[%c0_36, %c0_37] : memref<1x128xf32, #tpu.memory_space<vmem>>, vector<1x128xf32>
      %64 = vector.broadcast %63 : vector<1x128xf32> to vector<16x128xf32>
      %65 = arith.addf %62, %64 : vector<16x128xf32>
      %c0_38 = arith.constant 0 : index
      %c0_39 = arith.constant 0 : index
      %c0_40 = arith.constant 0 : index
      %66 = vector.load %arg9[%c0_38, %c0_39, %c0_40] : memref<1x16x128xf32, #tpu.memory_space<vmem>>, vector<1x16x128xf32>
      %67 = vector.shape_cast %66 : vector<1x16x128xf32> to vector<16x128xf32>
      %68 = vector.shape_cast %65 : vector<16x128xf32> to vector<1x16x128xf32>
      tpu.vector_store %arg9[%c0_38, %c0_39, %c0_40], %68 {strides = array<i32>} : memref<1x16x128xf32, #tpu.memory_space<vmem>>, vector<1x16x128xf32>,
    } else {
    }
    return
  }
  func.func @transform_0(%arg0: i32, %arg1: i32) -> (i32, i32, i32) {
    %c0_i32 = arith.constant 0 : i32
    %c0_i32_0 = arith.constant 0 : i32
    %c0_i32_1 = arith.constant 0 : i32
    return %arg0, %c0_i32, %c0_i32_0 : i32, i32, i32
  }
  func.func @transform_1(%arg0: i32, %arg1: i32) -> (i32, i32, i32) {
    %c0_i32 = arith.constant 0 : i32
    %c0_i32_0 = arith.constant 0 : i32
    %c0_i32_1 = arith.constant 0 : i32
    return %arg1, %c0_i32, %c0_i32_0 : i32, i32, i32
  }
  func.func @transform_2(%arg0: i32, %arg1: i32) -> (i32, i32, i32) {
    %c0_i32 = arith.constant 0 : i32
    %c0_i32_0 = arith.constant 0 : i32
    %c0_i32_1 = arith.constant 0 : i32
    return %arg1, %c0_i32, %c0_i32_0 : i32, i32, i32
  }
  func.func @transform_3(%arg0: i32, %arg1: i32) -> (i32, i32, i32) {
    %c0_i32 = arith.constant 0 : i32
    %c0_i32_0 = arith.constant 0 : i32
    %c0_i32_1 = arith.constant 0 : i32
    return %arg1, %c0_i32, %c0_i32_0 : i32, i32, i32
  }
  func.func @transform_4(%arg0: i32, %arg1: i32) -> (i32, i32, i32) {
    %c0_i32 = arith.constant 0 : i32
    %c0_i32_0 = arith.constant 0 : i32
    %c0_i32_1 = arith.constant 0 : i32
    return %arg1, %c0_i32, %c0_i32_0 : i32, i32, i32
  }
  func.func @transform_5(%arg0: i32, %arg1: i32) -> (i32, i32) {
    %c0_i32 = arith.constant 0 : i32
    %c0_i32_0 = arith.constant 0 : i32
    %c0_i32_1 = arith.constant 0 : i32
    return %c0_i32, %c0_i32_0 : i32, i32
  }
  func.func @transform_6(%arg0: i32, %arg1: i32) -> (i32, i32) {
    %c0_i32 = arith.constant 0 : i32
    %c0_i32_0 = arith.constant 0 : i32
    %c0_i32_1 = arith.constant 0 : i32
    return %c0_i32, %c0_i32_0 : i32, i32
  }
  func.func @transform_7(%arg0: i32, %arg1: i32) -> (i32, i32, i32) {
    %c0_i32 = arith.constant 0 : i32
    %c0_i32_0 = arith.constant 0 : i32
    %c0_i32_1 = arith.constant 0 : i32
    return %arg0, %c0_i32, %c0_i32_0 : i32, i32, i32
  }
}

</mosaic_0001>

<llo_original>
// kernel: tpu_custom_call.1
$region0: #{tpu_custom_call.1}
  #allocation0 [shape = 'u32[]', space=smem, size = 0x4, offset = 0x4, fixed_abs, tag = 'smem constant byte address 0x4 - core index']
  #allocation1 [shape = 'u32[72,128]{1,0:T(1,128)}', space=vmem, size = 0x9000, scoped, tag = 'internal scratch']
  #allocation2 [shape = 'f32[16,32]{1,0:T(8,128)}', space=vmem, size = 0x2000, scoped, tag = 'scratch operand']
  #allocation3 [shape = 'bf16[48,32]{1,0:T(8,128)(2,1)}', space=vmem, size = 0x3000, scoped, tag = 'scratch operand']
  %s0 = inlined_call_operand.vmem [shape: f32[2,16,32], index: 0, kind: input, shape index: {}]
  %s1 = inlined_call_operand.vmem [shape: bf16[5,16,48], index: 1, kind: input, shape index: {}]
  %s2 = inlined_call_operand.vmem [shape: f32[5,16,1], index: 2, kind: input, shape index: {}]
  %s3 = inlined_call_operand.hbm [shape: f32[5,1,32], index: 3, kind: input, shape index: {}]
  %s4 = inlined_call_operand.hbm [shape: f32[5,1,32], index: 4, kind: input, shape index: {}]
  %s5 = inlined_call_operand.vmem [shape: bf16[32,128], index: 5, kind: input, shape index: {}]
  %s6 = inlined_call_operand.vmem [shape: f32[1,128], index: 6, kind: input, shape index: {}]
  %s7 = inlined_call_operand.hbm [shape: f32[2,16,128], index: 7, kind: output, shape index: {}]
  %s8 = sld [smem:[#allocation0]]
  $region77: #{tpu_custom_call.1} parent=0
    _
  %s10 = ssub.s32 1, %s8
  %s11 = scalar_select 0, %s10, %s8
  $region1: #{tpu_custom_call.1} parent=0
    #allocation4 [shape = 'u8[1024]{0}', space=vmem, size = 0x400, scoped, tag = 'input window, operand 3']
    #allocation5 [shape = 's32[2]{0}', space=sflag, size = 0x8, scoped, tag = 'scoped memory for tpu_custom_call.1']
    #allocation6 [shape = 's32[2]{0}', space=sflag, size = 0x8, scoped, tag = 'scoped memory for tpu_custom_call.1']
    #allocation7 [shape = 'u8[1024]{0}', space=vmem, size = 0x400, scoped, tag = 'input window, operand 4']
    #allocation8 [shape = 's32[2]{0}', space=sflag, size = 0x8, scoped, tag = 'scoped memory for tpu_custom_call.1']
    #allocation9 [shape = 'u8[16384]{0}', space=vmem, size = 0x4000, scoped, tag = 'output window, operand 0']
    %12 = vsyncpa [#allocation5], 0
    %s13 = scalar_lea.sflag [#allocation5], 1
    %14 = vsyncpa %s13, 0
    %15 = vsyncpa [#allocation8], 0
    %s16 = scalar_lea.sflag [#allocation8], 1
    %17 = vsyncpa %s16, 0
    %18 = vsyncpa [#allocation6], 0
    %s19 = scalar_lea.sflag [#allocation6], 1
    %20 = vsyncpa %s19, 0
    loop: start=0, step=1, limit=12
    $region2: #{tpu_custom_call.1} parent=1 // loop_pre_header
      _
    $region3: #{tpu_custom_call.1} parent=1 // loop_header
      %s22 = sphi 0, %s26
      %p23 = scmp.ge.s32.totalorder %s22, 12
      %s29 = sphi 0, %s41
      %s30 = sphi 0, %s37
      %s31 = sphi 0, %s29
      %s32 = sphi 0, %s30
      %s33 = sphi 0, %s31
      %s34 = sphi 0, %s32
      %s44 = sphi 0, %s46
      %s47 = sphi 0, %s44
      %s48 = sphi 0, %s47
      %s64 = sphi 0, %s48
      %s70 = sphi 0, %s72
      %s73 = sphi 0, %s70
      %s74 = sphi 0, %s73
      %s90 = sphi 0, %s74
      %s96 = sphi 0, %s98
      %s99 = sphi 0, %s96
      %s100 = sphi 0, %s99
      %s116 = sphi 0, %s100
      %s122 = sphi 0, %s124
      %s125 = sphi 0, %s122
      %s126 = sphi 0, %s125
      %s142 = sphi 0, %s126
      %s148 = sphi 0, %s150
      %s151 = sphi 0, %s148
      %s152 = sphi 0, %s151
      %s168 = sphi 0, %s152
      %s172 = sphi 0, %s172
      %s174 = sphi 0, %s172
      %s175 = sphi 0, %s174
      %s189 = sphi 0, %s175
      %s193 = sphi 0, %s193
      %s195 = sphi 0, %s193
      %s196 = sphi 0, %s195
      %s210 = sphi 0, %s196
      %s216 = sphi 0, %s218
      %s219 = sphi 0, %s216
      %s220 = sphi 0, %s219
      %s236 = sphi 0, %s220
    $region4: #{tpu_custom_call.1} parent=1 // loop_header_branch
      %25 = sbr.rel (%p23) target = $region8
    $region5: #{tpu_custom_call.1} parent=1 // loop_body
      %s27 = ssub.s32 %s22, 1
      %s28 = ssub.s32 %s22, 2
      %s35 = sadd.s32 1, %s30
      %p36 = scmp.ge.s32.totalorder %s35, 5
      %s37 = scalar_select %p36, 0, %s35
      %s38 = sadd.s32 1, %s29
      %s39 = scalar_select %p36, %s38, %s29
      %p40 = scmp.ge.s32.totalorder %s39, 2
      %s41 = scalar_select %p40, 0, %s39
      %s42 = ssub.s32 %s29, %s41
      %p43 = scmp.eq.s32.totalorder %s42, 0
      %s45 = sadd.s32 %s44, 1
      %s46 = scalar_select %p43, %s44, %s45
      %p49 = pneg %p43
      %p50 = scmp.eq.s32.totalorder %s22, 9
      %p51 = por %p49, %p50
      %p52 = scmp.ne.s32.totalorder %s44, %s47
      %p53 = scmp.eq.s32.totalorder %s22, 0
      %p54 = por %p52, %p53
      %p55 = scmp.ne.s32.totalorder %s44, %s47
      %p56 = scmp.eq.s32.totalorder %s27, 9
      %p57 = por %p55, %p56
      %p58 = scmp.ne.s32.totalorder %s47, %s48
      %p59 = scmp.eq.s32.totalorder %s27, 0
      %p60 = por %p58, %p59
      %p61 = scmp.ne.s32.totalorder %s47, %s48
      %p62 = scmp.eq.s32.totalorder %s28, 9
      %p63 = por %p61, %p62
      %p65 = scmp.ne.s32.totalorder %s48, %s64
      %p66 = scmp.eq.s32.totalorder %s28, 0
      %p67 = por %p65, %p66
      %s68 = ssub.s32 %s30, %s37
      %p69 = scmp.eq.s32.totalorder %s68, 0
      %s71 = sadd.s32 %s70, 1
      %s72 = scalar_select %p69, %s70, %s71
      %p75 = pneg %p69
      %p76 = scmp.eq.s32.totalorder %s22, 9
      %p77 = por %p75, %p76
      %p78 = scmp.ne.s32.totalorder %s70, %s73
      %p79 = scmp.eq.s32.totalorder %s22, 0
      %p80 = por %p78, %p79
      %p81 = scmp.ne.s32.totalorder %s70, %s73
      %p82 = scmp.eq.s32.totalorder %s27, 9
      %p83 = por %p81, %p82
      %p84 = scmp.ne.s32.totalorder %s73, %s74
      %p85 = scmp.eq.s32.totalorder %s27, 0
      %p86 = por %p84, %p85
      %p87 = scmp.ne.s32.totalorder %s73, %s74
      %p88 = scmp.eq.s32.totalorder %s28, 9
      %p89 = por %p87, %p88
      %p91 = scmp.ne.s32.totalorder %s74, %s90
      %p92 = scmp.eq.s32.totalorder %s28, 0
      %p93 = por %p91, %p92
      %s94 = ssub.s32 %s30, %s37
      %p95 = scmp.eq.s32.totalorder %s94, 0
      %s97 = sadd.s32 %s96, 1
      %s98 = scalar_select %p95, %s96, %s97
      %p101 = pneg %p95
      %p102 = scmp.eq.s32.totalorder %s22, 9
      %p103 = por %p101, %p102
      %p104 = scmp.ne.s32.totalorder %s96, %s99
      %p105 = scmp.eq.s32.totalorder %s22, 0
      %p106 = por %p104, %p105
      %p107 = scmp.ne.s32.totalorder %s96, %s99
      %p108 = scmp.eq.s32.totalorder %s27, 9
      %p109 = por %p107, %p108
      %p110 = scmp.ne.s32.totalorder %s99, %s100
      %p111 = scmp.eq.s32.totalorder %s27, 0
      %p112 = por %p110, %p111
      %p113 = scmp.ne.s32.totalorder %s99, %s100
      %p114 = scmp.eq.s32.totalorder %s28, 9
      %p115 = por %p113, %p114
      %p117 = scmp.ne.s32.totalorder %s100, %s116
      %p118 = scmp.eq.s32.totalorder %s28, 0
      %p119 = por %p117, %p118
      %s120 = ssub.s32 %s30, %s37
      %p121 = scmp.eq.s32.totalorder %s120, 0
      %s123 = sadd.s32 %s122, 1
      %s124 = scalar_select %p121, %s122, %s123
      %p127 = pneg %p121
      %p128 = scmp.eq.s32.totalorder %s22, 9
      %p129 = por %p127, %p128
      %p130 = scmp.ne.s32.totalorder %s122, %s125
      %p131 = scmp.eq.s32.totalorder %s22, 0
      %p132 = por %p130, %p131
      %p133 = scmp.ne.s32.totalorder %s122, %s125
      %p134 = scmp.eq.s32.totalorder %s27, 9
      %p135 = por %p133, %p134
      %p136 = scmp.ne.s32.totalorder %s125, %s126
      %p137 = scmp.eq.s32.totalorder %s27, 0
      %p138 = por %p136, %p137
      %p139 = scmp.ne.s32.totalorder %s125, %s126
      %p140 = scmp.eq.s32.totalorder %s28, 9
      %p141 = por %p139, %p140
      %p143 = scmp.ne.s32.totalorder %s126, %s142
      %p144 = scmp.eq.s32.totalorder %s28, 0
      %p145 = por %p143, %p144
      %s146 = ssub.s32 %s30, %s37
      %p147 = scmp.eq.s32.totalorder %s146, 0
      %s149 = sadd.s32 %s148, 1
      %s150 = scalar_select %p147, %s148, %s149
      %p153 = pneg %p147
      %p154 = scmp.eq.s32.totalorder %s22, 9
      %p155 = por %p153, %p154
      %p156 = scmp.ne.s32.totalorder %s148, %s151
      %p157 = scmp.eq.s32.totalorder %s22, 0
      %p158 = por %p156, %p157
      %p159 = scmp.ne.s32.totalorder %s148, %s151
      %p160 = scmp.eq.s32.totalorder %s27, 9
      %p161 = por %p159, %p160
      %p162 = scmp.ne.s32.totalorder %s151, %s152
      %p163 = scmp.eq.s32.totalorder %s27, 0
      %p164 = por %p162, %p163
      %p165 = scmp.ne.s32.totalorder %s151, %s152
      %p166 = scmp.eq.s32.totalorder %s28, 9
      %p167 = por %p165, %p166
      %p169 = scmp.ne.s32.totalorder %s152, %s168
      %p170 = scmp.eq.s32.totalorder %s28, 0
      %p171 = por %p169, %p170
      %s173 = sadd.s32 %s172, 1
      %p176 = scmp.eq.s32.totalorder %s22, 9
      %p177 = scmp.ne.s32.totalorder %s172, %s174
      %p178 = scmp.eq.s32.totalorder %s22, 0
      %p179 = por %p177, %p178
      %p180 = scmp.ne.s32.totalorder %s172, %s174
      %p181 = scmp.eq.s32.totalorder %s27, 9
      %p182 = por %p180, %p181
      %p183 = scmp.ne.s32.totalorder %s174, %s175
      %p184 = scmp.eq.s32.totalorder %s27, 0
      %p185 = por %p183, %p184
      %p186 = scmp.ne.s32.totalorder %s174, %s175
      %p187 = scmp.eq.s32.totalorder %s28, 9
      %p188 = por %p186, %p187
      %p190 = scmp.ne.s32.totalorder %s175, %s189
      %p191 = scmp.eq.s32.totalorder %s28, 0
      %p192 = por %p190, %p191
      %s194 = sadd.s32 %s193, 1
      %p197 = scmp.eq.s32.totalorder %s22, 9
      %p198 = scmp.ne.s32.totalorder %s193, %s195
      %p199 = scmp.eq.s32.totalorder %s22, 0
      %p200 = por %p198, %p199
      %p201 = scmp.ne.s32.totalorder %s193, %s195
      %p202 = scmp.eq.s32.totalorder %s27, 9
      %p203 = por %p201, %p202
      %p204 = scmp.ne.s32.totalorder %s195, %s196
      %p205 = scmp.eq.s32.totalorder %s27, 0
      %p206 = por %p204, %p205
      %p207 = scmp.ne.s32.totalorder %s195, %s196
      %p208 = scmp.eq.s32.totalorder %s28, 9
      %p209 = por %p207, %p208
      %p211 = scmp.ne.s32.totalorder %s196, %s210
      %p212 = scmp.eq.s32.totalorder %s28, 0
      %p213 = por %p211, %p212
      %s214 = ssub.s32 %s29, %s41
      %p215 = scmp.eq.s32.totalorder %s214, 0
      %s217 = sadd.s32 %s216, 1
      %s218 = scalar_select %p215, %s216, %s217
      %p221 = pneg %p215
      %p222 = scmp.eq.s32.totalorder %s22, 9
      %p223 = por %p221, %p222
      %p224 = scmp.ne.s32.totalorder %s216, %s219
      %p225 = scmp.eq.s32.totalorder %s22, 0
      %p226 = por %p224, %p225
      %p227 = scmp.ne.s32.totalorder %s216, %s219
      %p228 = scmp.eq.s32.totalorder %s27, 9
      %p229 = por %p227, %p228
      %p230 = scmp.ne.s32.totalorder %s219, %s220
      %p231 = scmp.eq.s32.totalorder %s27, 0
      %p232 = por %p230, %p231
      %p233 = scmp.ne.s32.totalorder %s219, %s220
      %p234 = scmp.eq.s32.totalorder %s28, 9
      %p235 = por %p233, %p234
      %p237 = scmp.ne.s32.totalorder %s220, %s236
      %p238 = scmp.eq.s32.totalorder %s28, 0
      %p239 = por %p237, %p238
      %p240 = scmp.le.s32.totalorder 1, %s22
      %p241 = scmp.lt.s32.totalorder %s22, 11
      %p242 = pnand %p240, %p241
      %p243 = pneg %p242
      // Predicated region
      $region9: #{tpu_custom_call.1} parent=5 // pred_check
        _
      $region10: #{tpu_custom_call.1} parent=5 // pred_check_branch
        %245 = sbr.rel (%p242) target = $region12
      $region11: #{tpu_custom_call.1} parent=5 // pred_region
        %s246 = ssub.s32 %s22, 1
        // Predicated region
        $region13: #{tpu_custom_call.1} parent=11 // pred_check
          %p247 = pneg %p185
        $region14: #{tpu_custom_call.1} parent=11 // pred_check_branch
          %249 = sbr.rel (%p247) target = $region16
        $region15: #{tpu_custom_call.1} parent=11 // pred_region
          _
        $region16: #{tpu_custom_call.1} parent=11 // pred_fallthru
          _
        // Predicated region
        $region17: #{tpu_custom_call.1} parent=11 // pred_check
          %p250 = pneg %p206
        $region18: #{tpu_custom_call.1} parent=11 // pred_check_branch
          %252 = sbr.rel (%p250) target = $region20
        $region19: #{tpu_custom_call.1} parent=11 // pred_region
          _
        $region20: #{tpu_custom_call.1} parent=11 // pred_fallthru
          _
      $region12: #{tpu_custom_call.1} parent=5 // pred_fallthru
        _
      %p253 = scmp.lt.s32.totalorder %s22, 10
      // Predicated region
      $region21: #{tpu_custom_call.1} parent=5 // pred_check
        %p254 = pneg %p253
      $region22: #{tpu_custom_call.1} parent=5 // pred_check_branch
        %256 = sbr.rel (%p254) target = $region24
      $region23: #{tpu_custom_call.1} parent=5 // pred_region
        // Predicated region
        $region25: #{tpu_custom_call.1} parent=23 // pred_check
          %p257 = pneg %p54
        $region26: #{tpu_custom_call.1} parent=23 // pred_check_branch
          %259 = sbr.rel (%p257) target = $region28
        $region27: #{tpu_custom_call.1} parent=23 // pred_region
          %p260 = scmp.lt.s32.totalorder %s29, 1
          %s261 = scalar_select %p260, %s29, 1
          %s262 = smul.addr %s261, 2
          %s263 = smul.addr %s262, 8
          %s264 = scalar_lea.vmem %s0, %s263
        $region28: #{tpu_custom_call.1} parent=23 // pred_fallthru
          _
        // Predicated region
        $region29: #{tpu_custom_call.1} parent=23 // pred_check
          %p265 = pneg %p80
        $region30: #{tpu_custom_call.1} parent=23 // pred_check_branch
          %267 = sbr.rel (%p265) target = $region32
        $region31: #{tpu_custom_call.1} parent=23 // pred_region
          %p268 = scmp.lt.s32.totalorder %s30, 4
          %s269 = scalar_select %p268, %s30, 4
          %s270 = smul.addr %s269, 2
          %s271 = smul.addr %s270, 4
          %s272 = scalar_lea.vmem %s1, %s271
        $region32: #{tpu_custom_call.1} parent=23 // pred_fallthru
          _
        // Predicated region
        $region33: #{tpu_custom_call.1} parent=23 // pred_check
          %p273 = pneg %p106
        $region34: #{tpu_custom_call.1} parent=23 // pred_check_branch
          %275 = sbr.rel (%p273) target = $region36
        $region35: #{tpu_custom_call.1} parent=23 // pred_region
          %p276 = scmp.lt.s32.totalorder %s30, 4
          %s277 = scalar_select %p276, %s30, 4
          %s278 = smul.addr %s277, 2
          %s279 = smul.addr %s278, 8
          %s280 = scalar_lea.vmem %s2, %s279
        $region36: #{tpu_custom_call.1} parent=23 // pred_fallthru
          _
        // Predicated region
        $region37: #{tpu_custom_call.1} parent=23 // pred_check
          %p281 = pneg %p132
        $region38: #{tpu_custom_call.1} parent=23 // pred_check_branch
          %283 = sbr.rel (%p281) target = $region40
        $region39: #{tpu_custom_call.1} parent=23 // pred_region
          %s284 = sand.u32 %s122, 1
          %s285 = scalar_lea.sflag [#allocation5], %s284
          %s286 = sand.u32 %s122, 1
          %s287 = scalar_lea.vmem [#allocation4], %s286
          %289 = vsyncadd %s285, 0
          %s290 = scalar_lea.hbm %s3, %s30
          %s292 = sshll.u32 %s290, 4
          %s293 = int_to_ptr.hbm [resolvable:$true] %s292
          %s294 = sshll.u32 %s287, 4
          %s295 = int_to_ptr.vmem [resolvable:$true] %s294
          %297 = dma.hbm_to_vmem [thread:$0]  %s293, 16, %s295, %s285
        $region40: #{tpu_custom_call.1} parent=23 // pred_fallthru
          _
        // Predicated region
        $region41: #{tpu_custom_call.1} parent=23 // pred_check
          %p298 = pneg %p158
        $region42: #{tpu_custom_call.1} parent=23 // pred_check_branch
          %300 = sbr.rel (%p298) target = $region44
        $region43: #{tpu_custom_call.1} parent=23 // pred_region
          %s301 = sand.u32 %s148, 1
          %s302 = scalar_lea.sflag [#allocation8], %s301
          %s303 = sand.u32 %s148, 1
          %s304 = scalar_lea.vmem [#allocation7], %s303
          %306 = vsyncadd %s302, 0
          %s307 = scalar_lea.hbm %s4, %s30
          %s309 = sshll.u32 %s307, 4
          %s310 = int_to_ptr.hbm [resolvable:$true] %s309
          %s311 = sshll.u32 %s304, 4
          %s312 = int_to_ptr.vmem [resolvable:$true] %s311
          %314 = dma.hbm_to_vmem [thread:$0]  %s310, 16, %s312, %s302
        $region44: #{tpu_custom_call.1} parent=23 // pred_fallthru
          _
      $region24: #{tpu_custom_call.1} parent=5 // pred_fallthru
        _
      %p315 = scmp.le.s32.totalorder 1, %s22
      %p316 = scmp.lt.s32.totalorder %s22, 11
      %p317 = pnand %p315, %p316
      %p318 = pneg %p317
      // Predicated region
      $region45: #{tpu_custom_call.1} parent=5 // pred_check
        _
      $region46: #{tpu_custom_call.1} parent=5 // pred_check_branch
        %320 = sbr.rel (%p317) target = $region48
      $region47: #{tpu_custom_call.1} parent=5 // pred_region
        %s321 = ssub.s32 %s22, 1
        %s322 = sand.u32 %s125, 1
        %s323 = scalar_lea.sflag [#allocation5], %s322
        %s324 = sand.u32 %s125, 1
        %s325 = scalar_lea.vmem [#allocation4], %s324
        // Predicated region
        $region49: #{tpu_custom_call.1} parent=47 // pred_check
          %p326 = pneg %p138
        $region50: #{tpu_custom_call.1} parent=47 // pred_check_branch
          %328 = sbr.rel (%p326) target = $region52
        $region51: #{tpu_custom_call.1} parent=47 // pred_region
          %330 = dma.done %s323, 16
        $region52: #{tpu_custom_call.1} parent=47 // pred_fallthru
          _
        %s331 = sand.u32 %s151, 1
        %s332 = scalar_lea.sflag [#allocation8], %s331
        %s333 = sand.u32 %s151, 1
        %s334 = scalar_lea.vmem [#allocation7], %s333
        // Predicated region
        $region53: #{tpu_custom_call.1} parent=47 // pred_check
          %p335 = pneg %p164
        $region54: #{tpu_custom_call.1} parent=47 // pred_check_branch
          %337 = sbr.rel (%p335) target = $region56
        $region55: #{tpu_custom_call.1} parent=47 // pred_region
          %339 = dma.done %s332, 16
        $region56: #{tpu_custom_call.1} parent=47 // pred_fallthru
          _
        %p340 = scmp.lt.s32.totalorder %s31, 1
        %s341 = scalar_select %p340, %s31, 1
        %s342 = smul.addr %s341, 2
        %s343 = smul.addr %s342, 8
        %s344 = scalar_lea.vmem %s0, %s343
        %p345 = pneg %p60
        %p346 = pneg %p57
        %p347 = scmp.lt.s32.totalorder %s32, 4
        %s348 = scalar_select %p347, %s32, 4
        %s349 = smul.addr %s348, 2
        %s350 = smul.addr %s349, 4
        %s351 = scalar_lea.vmem %s1, %s350
        %p352 = pneg %p86
        %p353 = pneg %p83
        %p354 = scmp.lt.s32.totalorder %s32, 4
        %s355 = scalar_select %p354, %s32, 4
        %s356 = smul.addr %s355, 2
        %s357 = smul.addr %s356, 8
        %s358 = scalar_lea.vmem %s2, %s357
        %p359 = pneg %p112
        %p360 = pneg %p109
        %s361 = sand.u32 %s125, 1
        %s362 = scalar_lea.sflag [#allocation5], %s361
        %s363 = sand.u32 %s125, 1
        %s364 = scalar_lea.vmem [#allocation4], %s363
        %p365 = pneg %p138
        %p366 = pneg %p135
        %s367 = sand.u32 %s151, 1
        %s368 = scalar_lea.sflag [#allocation8], %s367
        %s369 = sand.u32 %s151, 1
        %s370 = scalar_lea.vmem [#allocation7], %s369
        %p371 = pneg %p164
        %p372 = pneg %p161
        %p373 = pneg %p185
        %p374 = pneg %p182
        %p375 = pneg %p206
        %p376 = pneg %p203
        %p377 = pneg %p232
        %p378 = pneg %p229
        %s379 = sand.u32 %s219, 1
        %s380 = scalar_lea.sflag [#allocation6], %s379
        %s381 = sand.u32 %s219, 1
        %s382 = smul.addr %s381, 16
        %s383 = scalar_lea.vmem [#allocation9], %s382
        %p384 = scmp.lt.s32.totalorder %s31, 1
        %s385 = scalar_select %p384, %s31, 1
        %s386 = smul.addr %s385, 2
        %s387 = smul.addr %s386, 8
        %s388 = scalar_lea.vmem %s0, %s387
        %p389 = scmp.lt.s32.totalorder %s32, 4
        %s390 = scalar_select %p389, %s32, 4
        %s391 = smul.addr %s390, 2
        %s392 = smul.addr %s391, 4
        %s393 = scalar_lea.vmem %s1, %s392
        %p394 = scmp.lt.s32.totalorder %s32, 4
        %s395 = scalar_select %p394, %s32, 4
        %s396 = smul.addr %s395, 2
        %s397 = smul.addr %s396, 8
        %s398 = scalar_lea.vmem %s2, %s397
        %p400 = scmp.eq.s32.totalorder %s32, 0
        // Predicated region
        $region57: #{tpu_custom_call.1} parent=47 // pred_check
          %p401 = pneg %p400
        $region58: #{tpu_custom_call.1} parent=47 // pred_check_branch
          %403 = sbr.rel (%p401) target = $region60
        $region59: #{tpu_custom_call.1} parent=47 // pred_region
          %v404 = vld [vmem:[%s388] sm:$0xff]
          %v405 = vld [vmem:[%s388 + $0x8] sm:$0xff]
          %vm406 = vcmask 261120
          %407 = vst.msk [vmem:[#allocation2] sm:$0xff] %vm406, %v404
          %408 = vst.msk [vmem:[#allocation2 + $0x8] sm:$0xff] %vm406, %v405
        $region60: #{tpu_custom_call.1} parent=47 // pred_fallthru
          _
        %v409 = vld [vmem:[#allocation2] sm:$0xff]
        %v410 = vld [vmem:[#allocation2 + $0x8] sm:$0xff]
        %v411 = vlaneseq
        %v412 = vand.u32 %v411, 127
        %vm413 = vcmp.eq.s32.totalorder %v412, 0
        %vm414 = vcmask 1047808
        %415 = vrot.lane.b32.xlu0 %v409, 32
        %v416 = vpop.permute.xlu0 %415
        %v417 = vsel %vm414, %v416, %v409
        %418 = vrot.lane.b32.xlu0 %v410, 32
        %v419 = vpop.permute.xlu0 %418
        %v420 = vsel %vm414, %v419, %v410
        %421 = vrot.lane.b32.xlu0 %v417, 32
        %v422 = vpop.permute.xlu0 %421
        %423 = vrot.lane.b32.xlu0 %v420, 32
        %v424 = vpop.permute.xlu0 %423
        %v425 = vsel %vm414, %v422, %v409
        %v426 = vsel %vm414, %v424, %v410
        %429 = vrot.lane.b32.xlu0 %v425, 97
        %v430 = vpop.permute.xlu0 %429
        %431 = vrot.lane.b32.xlu0 %v426, 97
        %v432 = vpop.permute.xlu0 %431
        %v435 = vsel %vm413, 0.0, %v430
        %v436 = vsel %vm413, 0.0, %v432
        %vm437 = vcmp.eq.s32.totalorder %v412, 31
        %438 = vrot.lane.b32.xlu0 %v425, 127
        %v439 = vpop.permute.xlu0 %438
        %440 = vrot.lane.b32.xlu0 %v426, 127
        %v441 = vpop.permute.xlu0 %440
        %v444 = vsel %vm437, 0.0, %v439
        %v445 = vsel %vm437, 0.0, %v441
        %v446 = vpack.c.bf16 %v435, %v435
        %v447 = vpack.c.bf16 %v436, %v436
        %vm448 = vcmask 257024
        %449 = vst.msk [vmem:[#allocation3] sm:$0xf] %vm448, %v446
        %450 = vst.msk [vmem:[#allocation3 + $0x4] sm:$0xf] %vm448, %v447
        %v451 = vpack.c.bf16 %v409, %v409
        %v452 = vpack.c.bf16 %v410, %v410
        %453 = vst.msk [vmem:[#allocation3 + $0x8] sm:$0xf] %vm448, %v451
        %454 = vst.msk [vmem:[#allocation3 + $0xc] sm:$0xf] %vm448, %v452
        %v455 = vpack.c.bf16 %v444, %v444
        %v456 = vpack.c.bf16 %v445, %v445
        %457 = vst.msk [vmem:[#allocation3 + $0x10] sm:$0xf] %vm448, %v455
        %458 = vst.msk [vmem:[#allocation3 + $0x14] sm:$0xf] %vm448, %v456
        %v459 = vld [vmem:[%s393] sm:$0xf]
        %v460 = vld [vmem:[%s393 + $0x4] sm:$0xf]
        %v461 = vld [vmem:[#allocation3] sm:$0xf]
        %v462 = vld [vmem:[#allocation3 + $0x4] sm:$0xf]
        %v463 = vld [vmem:[#allocation3 + $0x8] sm:$0xf]
        %v464 = vld [vmem:[#allocation3 + $0xc] sm:$0xf]
        %v465 = vld [vmem:[#allocation3 + $0x10] sm:$0xf]
        %v466 = vld [vmem:[#allocation3 + $0x14] sm:$0xf]
        %v467 = vld [vmem:[%s398] sm:$0xff]
        %v468 = vld [vmem:[%s398 + $0x8] sm:$0xff]
        %470 = vset.pattern.permute.xlu0 0
        %471 = vperm.xlu0 %470, %v467
        %v472 = vpop.permute.xlu0 %471
        %475 = vset.pattern.permute.xlu0 0
        %476 = vperm.xlu0 %475, %v468
        %v477 = vpop.permute.xlu0 %476
        %v481 = vunpack.c.l.b16 %v459
        %v482 = vunpack.c.l.b16 %v460
        %v483 = vpack.c.b16 %v482, %v481
        %v490 = vunpack.c.l.b16 %v461
        %v491 = vunpack.c.l.b16 %v462
        %v492 = vunpack.c.l.b16 %v463
        %v493 = vunpack.c.l.b16 %v464
        %v494 = vunpack.c.l.b16 %v465
        %v495 = vunpack.c.l.b16 %v466
        %v496 = vpack.c.b16 %v491, %v490
        %v497 = vpack.c.b16 %v493, %v492
        %v498 = vpack.c.b16 %v495, %v494
        %vm502 = vcmask 392192
        %v504 = vsel %vm502, %v483, 0
        %506 = vmatpush.bf16.msra.mxu0 0
        %507 = vmatpush.bf16.msra.mxu0 0
        %508 = vmatpush.bf16.msra.mxu0 0
        %509 = vmatpush.bf16.msra.mxu0 0
        %510 = vmatpush.bf16.msra.mxu0 0
        %511 = vmatpush.bf16.msra.mxu0 %v498
        %512 = vmatpush.bf16.msra.mxu0 %v497
        %513 = vmatpush.bf16.msra.mxu0 %v496
        %514 = vmatmul.bf16.gmra.mxu0 %v504
        %v515 = vpop.f32.mrf.mxu0
        %v516 = vadd.f32 %v472, %v515
        %v517 = vpop.f32.mrf.mxu0
        %v518 = vadd.f32 %v477, %v517
        %519 = vdwg.mxu0
        %v520 = vmax.f32 %v516, 0.0
        %v521 = vmax.f32 %v518, 0.0
        %v522 = vadd.f32 %v409, %v520
        %v523 = vadd.f32 %v410, %v521
        %vm524 = vcmask 261120
        %v525 = vsel %vm524, %v522, 0.0
        %526 = vadd.xlane.f32.xlu0 %v525
        %v527 = vpop.xlane.xlu0 %526
        %v528 = vsel %vm524, %v523, 0.0
        %529 = vadd.xlane.f32.xlu0 %v528
        %v530 = vpop.xlane.xlu0 %529
        %v531 = vrcp.pop 32.0
        %v532 = vmul.f32 32.0, %v531
        %v533 = vsub.f32 1.0, %v532
        %v534 = vmul.f32 %v531, %v533
        %v535 = vadd.f32 %v531, %v534
        %vm536 = vweird.f32 %v531
        %v537 = vsel %vm536, %v531, %v535
        %v538 = vmul.f32 %v527, %v537
        %v539 = vmul.f32 %v530, %v537
        %v540 = vsub.f32 %v522, %v538
        %v541 = vsub.f32 %v523, %v539
        %v542 = vmul.f32 %v540, %v540
        %v543 = vmul.f32 %v541, %v541
        %v544 = vsel %vm524, %v542, 0.0
        %545 = vadd.xlane.f32.xlu0 %v544
        %v546 = vpop.xlane.xlu0 %545
        %v547 = vsel %vm524, %v543, 0.0
        %548 = vadd.xlane.f32.xlu0 %v547
        %v549 = vpop.xlane.xlu0 %548
        %v550 = vmul.f32 %v546, %v537
        %v551 = vmul.f32 %v549, %v537
        %v552 = vadd.f32 %v550, 1e-05
        %v553 = vadd.f32 %v551, 1e-05
        %v554 = vrsqrt.pop %v552
        %v555 = vmul.f32 %v554, %v552
        %v556 = vmul.f32 %v555, %v554
        %v557 = vmul.f32 0.5, %v556
        %v558 = vsub.f32 1.5, %v557
        %v559 = vmul.f32 %v554, %v558
        %vm560 = vweird.f32 %v552
        %vm561 = vweird.f32 %v554
        %vm562 = vmor %vm560, %vm561
        %v563 = vsel %vm562, %v554, %v559
        %v564 = vrsqrt.pop %v553
        %v565 = vmul.f32 %v564, %v553
        %v566 = vmul.f32 %v565, %v564
        %v567 = vmul.f32 0.5, %v566
        %v568 = vsub.f32 1.5, %v567
        %v569 = vmul.f32 %v564, %v568
        %vm570 = vweird.f32 %v553
        %vm571 = vweird.f32 %v564
        %vm572 = vmor %vm570, %vm571
        %v573 = vsel %vm572, %v564, %v569
        %v574 = vmul.f32 %v540, %v563
        %v575 = vmul.f32 %v541, %v573
        %v576 = vld [vmem:[%s325] sm:$0x1]
        %v578 = vperm.slane %v576, 0
        %v580 = vmul.f32 %v574, %v578
        %v581 = vmul.f32 %v575, %v578
        %v582 = vld [vmem:[%s334] sm:$0x1]
        %v584 = vperm.slane %v582, 0
        %v586 = vadd.f32 %v580, %v584
        %v587 = vadd.f32 %v581, %v584
        %588 = vst.msk [vmem:[#allocation2] sm:$0xff] %vm524, %v586
        %589 = vst.msk [vmem:[#allocation2 + $0x8] sm:$0xff] %vm524, %v587
        %p590 = scmp.eq.s32.totalorder %s32, 4
        // Predicated region
        $region61: #{tpu_custom_call.1} parent=47 // pred_check
          %p591 = pneg %p590
        $region62: #{tpu_custom_call.1} parent=47 // pred_check_branch
          %593 = sbr.rel (%p591) target = $region64
        $region63: #{tpu_custom_call.1} parent=47 // pred_region
          %v594 = vpack.c.bf16 %v587, %v586
          %v595 = vld [vmem:[%s5] sm:$0xf]
          %v596 = vld [vmem:[%s5 + $0x4] sm:$0xf]
          %v597 = vld [vmem:[%s5 + $0x8] sm:$0xf]
          %v598 = vld [vmem:[%s5 + $0xc] sm:$0xf]
          %v599 = vld [vmem:[%s6] sm:$0x1]
          %v601 = vperm.slane %v599, 0
          %v607 = vunpack.c.l.b16 %v595
          %v608 = vunpack.c.l.b16 %v596
          %v609 = vunpack.c.l.b16 %v597
          %v610 = vunpack.c.l.b16 %v598
          %v611 = vpack.c.b16 %v608, %v607
          %v612 = vpack.c.b16 %v610, %v609
          %v616 = vsel %vm524, %v594, 0
          %618 = vmatpush.bf16.msra.mxu0 0
          %619 = vmatpush.bf16.msra.mxu0 0
          %620 = vmatpush.bf16.msra.mxu0 0
          %621 = vmatpush.bf16.msra.mxu0 0
          %622 = vmatpush.bf16.msra.mxu0 0
          %623 = vmatpush.bf16.msra.mxu0 0
          %624 = vmatpush.bf16.msra.mxu0 %v612
          %625 = vmatpush.bf16.msra.mxu0 %v611
          %626 = vmatmul.bf16.gmra.mxu0 %v616
          %v627 = vpop.f32.mrf.mxu0
          %v628 = vadd.f32 %v601, %v627
          %v629 = vpop.f32.mrf.mxu0
          %v630 = vadd.f32 %v601, %v629
          %631 = vdwg.mxu0
          %632 = vst [vmem:[%s383] sm:$0xff] %v628
          %633 = vst [vmem:[%s383 + $0x8] sm:$0xff] %v630
        $region64: #{tpu_custom_call.1} parent=47 // pred_fallthru
          _
        %s634 = sand.u32 %s219, 1
        %s635 = scalar_lea.sflag [#allocation6], %s634
        %s636 = sand.u32 %s219, 1
        %s637 = smul.addr %s636, 16
        %s638 = scalar_lea.vmem [#allocation9], %s637
        // Predicated region
        $region65: #{tpu_custom_call.1} parent=47 // pred_check
          %p639 = pneg %p229
        $region66: #{tpu_custom_call.1} parent=47 // pred_check_branch
          %641 = sbr.rel (%p639) target = $region68
        $region67: #{tpu_custom_call.1} parent=47 // pred_region
          %643 = vsyncadd %s635, 0
          %s644 = smul.addr %s31, 2
          %s645 = smul.addr %s644, 8
          %s646 = scalar_lea.hbm %s7, %s645
          %s647 = sshll.u32 %s638, 4
          %s648 = int_to_ptr.vmem [resolvable:$true] %s647
          %s649 = sshll.u32 %s646, 4
          %s650 = int_to_ptr.hbm [resolvable:$true] %s649
          %655 = dma.vmem_to_hbm [thread:$0]  %s648, 256, %s650, %s635, 128, 128, 8
        $region68: #{tpu_custom_call.1} parent=47 // pred_fallthru
          _
      $region48: #{tpu_custom_call.1} parent=5 // pred_fallthru
        _
      %p656 = scmp.le.s32.totalorder 2, %s22
      // Predicated region
      $region69: #{tpu_custom_call.1} parent=5 // pred_check
        %p657 = pneg %p656
      $region70: #{tpu_custom_call.1} parent=5 // pred_check_branch
        %659 = sbr.rel (%p657) target = $region72
      $region71: #{tpu_custom_call.1} parent=5 // pred_region
        %s660 = ssub.s32 %s22, 2
        // Predicated region
        $region73: #{tpu_custom_call.1} parent=71 // pred_check
          %p661 = pneg %p235
        $region74: #{tpu_custom_call.1} parent=71 // pred_check_branch
          %663 = sbr.rel (%p661) target = $region76
        $region75: #{tpu_custom_call.1} parent=71 // pred_region
          %s664 = sand.u32 %s220, 1
          %s665 = scalar_lea.sflag [#allocation6], %s664
          %s666 = sand.u32 %s220, 1
          %s667 = smul.addr %s666, 16
          %s668 = scalar_lea.vmem [#allocation9], %s667
          %670 = dma.done %s665, 256
        $region76: #{tpu_custom_call.1} parent=71 // pred_fallthru
          _
      $region72: #{tpu_custom_call.1} parent=5 // pred_fallthru
        _
    $region6: #{tpu_custom_call.1} parent=1 // loop_footer
      %s26 = sadd.s32 1, %s22
    $region7: #{tpu_custom_call.1} parent=1 // loop_footer_branch
      %21 = sbr.rel target = $region3
    $region8: #{tpu_custom_call.1} parent=1 // loop_exit
      _
    %671 = vsyncpa [#allocation5], 1
    %s672 = scalar_lea.sflag [#allocation5], 1
    %673 = vsyncpa %s672, 1
    %674 = vsyncpa [#allocation8], 1
    %s675 = scalar_lea.sflag [#allocation8], 1
    %676 = vsyncpa %s675, 1
    %677 = vsyncpa [#allocation6], 1
    %s678 = scalar_lea.sflag [#allocation6], 1
    %679 = vsyncpa %s678, 1

</llo_original>
